<compile_context>
chip_gen: v7x
topology: tpu7x:2x2x1
jax: 0.10.0
libtpu: 0.0.40
codegen_flags: <defaults>
</compile_context>

<pallas_src>
import functools

import jax
import jax.numpy as jnp
from jax.experimental import pallas as pl
from jax.experimental.pallas import tpu as pltpu


# ----------------------------- dropout PRNG ---------------------------------

def _hash_u32(v):
    """lowbias32 integer hash; pure uint32 elementwise ops (VPU-friendly)."""
    v = v ^ (v >> 16)
    v = v * jnp.uint32(0x7FEB352D)
    v = v ^ (v >> 15)
    v = v * jnp.uint32(0x846CA68B)
    v = v ^ (v >> 16)
    return v


def _dropout_bits(shape, row0, col0, d_ff, seed_u32):
    """Random uint32 per (global_row, global_col) element; tiling-invariant."""
    rows = jax.lax.broadcasted_iota(jnp.int32, shape, 0).astype(jnp.uint32) + row0
    cols = jax.lax.broadcasted_iota(jnp.int32, shape, 1).astype(jnp.uint32) + col0
    idx = rows * jnp.uint32(d_ff) + cols
    return _hash_u32(idx ^ (seed_u32 * jnp.uint32(0x9E3779B9)))


def _dropout_threshold(rate: float):
    return jnp.uint32(min(int(round(rate * 2.0 ** 32)), 2 ** 32 - 1))


# ------------------------------- kernel -------------------------------------

def _ffn_kernel(seed_ref, x_ref, w1_ref, b1_ref, w2_ref, b2_ref, o_ref, acc_ref,
                *, dropout_rate: float, d_ff: int, tm: int, tk: int):
    k = pl.program_id(1)
    nk = pl.num_programs(1)

    @pl.when(k == 0)
    def _init():
        acc_ref[...] = jnp.zeros_like(acc_ref)

    # linear_1 chunk: (tm, d_model) @ (d_model, tk) -> f32 (tm, tk)
    h = jnp.dot(x_ref[...], w1_ref[...], preferred_element_type=jnp.float32)
    h = jnp.maximum(h + b1_ref[...].astype(jnp.float32), 0.0)

    if dropout_rate > 0.0:
        i = pl.program_id(0)
        row0 = (i * tm).astype(jnp.uint32)
        col0 = (k * tk).astype(jnp.uint32)
        seed_u = seed_ref[0].astype(jnp.uint32)
        bits = _dropout_bits((tm, tk), row0, col0, d_ff, seed_u)
        keep = bits >= _dropout_threshold(dropout_rate)     # P(keep) = 1 - p
        h = jnp.where(keep, h, 0.0) * jnp.float32(1.0 / (1.0 - dropout_rate))

    # partial linear_2: (tm, tk) @ (tk, d_model) in f32
    partial = jnp.dot(h.astype(w2_ref.dtype), w2_ref[...],
                      preferred_element_type=jnp.float32)

    @pl.when(k < nk - 1)
    def _accum():
        acc_ref[...] += partial

    @pl.when(k == nk - 1)
    def _finish():
        # Fuse last partial + bias directly into the store (skips one acc write+read).
        out = acc_ref[...] + partial + b2_ref[...].astype(jnp.float32)
        o_ref[...] = out.astype(o_ref.dtype)


# ------------------------------- wrapper -------------------------------------

def _vmem_estimate(tm, tk, d_model, in_isize, w_isize, out_isize):
    return (2 * tm * d_model * in_isize        # x blocks (double-buffered)
            + 2 * d_model * tk * w_isize       # w1 blocks
            + 2 * tk * 4                       # b1 blocks (f32)
            + 2 * tk * d_model * w_isize       # w2 blocks
            + 2 * d_model * 4                  # b2 blocks (f32)
            + 2 * tm * d_model * out_isize     # output blocks
            + tm * d_model * 4                 # f32 accumulator scratch
            + 2 * tm * tk * 4)                 # hidden-chunk temporaries


def feed_forward_block(x, w1, b1, w2, b2, *, dropout_rate: float, seed: int = 0,
                       training: bool = True, mxu_dtype=None,
                       tm: int = None, tk: int = None):
    """x: (B, S, d_model). Weights stored (in_features, out_features)."""
    B, S, d_model = x.shape
    d_ff = w1.shape[1]
    assert w1.shape == (d_model, d_ff) and w2.shape == (d_ff, d_model)
    assert 0.0 <= float(dropout_rate) < 1.0, "dropout_rate must be in [0, 1)"
    M = B * S
    out_dtype = x.dtype

    x2 = x.reshape(M, d_model)
    if mxu_dtype is not None:                      # bf16 MXU path: halve weight DMA
        x2 = x2.astype(mxu_dtype)
        w1 = w1.astype(mxu_dtype)
        w2 = w2.astype(mxu_dtype)
    b1 = b1.reshape(1, d_ff).astype(jnp.float32)
    b2 = b2.reshape(1, d_model).astype(jnp.float32)

    in_isize = jnp.dtype(x2.dtype).itemsize
    w_isize = jnp.dtype(w1.dtype).itemsize
    out_isize = jnp.dtype(out_dtype).itemsize

    # ---- tile selection (MXU-aligned, VMEM-bounded; safe on v5e/v6e/v7x) ----
    if tm is None:
        tm = next((t for t in (256, 128, 64, 32, 16, 8) if M % t == 0), M)
    assert M % tm == 0
    if tk is None:
        cands = [t for t in (2048, 1024, 512, 256, 128) if d_ff % t == 0] or [d_ff]
        budget = 24 * 2 ** 20        # conservative so it also fits v7x (64 MiB VMEM)
        tk = cands[-1]
        for t in cands:
            if _vmem_estimate(tm, t, d_model, in_isize, w_isize, out_isize) <= budget:
                tk = t
                break
    assert d_ff % tk == 0

    grid_m, grid_k = M // tm, d_ff // tk

    rate = float(dropout_rate) if training else 0.0
    seed_arr = jnp.asarray([seed], dtype=jnp.int32)

    kernel = functools.partial(_ffn_kernel, dropout_rate=rate, d_ff=d_ff,
                               tm=tm, tk=tk)

    est = _vmem_estimate(tm, tk, d_model, in_isize, w_isize, out_isize)
    vmem_limit = int(min(56 * 2 ** 20, max(32 * 2 ** 20, 2 * est)))

    flops = 4 * M * d_model * d_ff                       # two matmuls
    bytes_accessed = int(M * d_model * (in_isize + out_isize)
                         + grid_m * ((w1.size + w2.size) * w_isize
                                     + (b1.size + b2.size) * 4))

    out2 = pl.pallas_call(
        kernel,
        out_shape=jax.ShapeDtypeStruct((M, d_model), out_dtype),
        grid_spec=pltpu.PrefetchScalarGridSpec(
            num_scalar_prefetch=1,
            grid=(grid_m, grid_k),
            in_specs=[
                pl.BlockSpec((tm, d_model), lambda i, k, s: (i, 0)),   # x
                pl.BlockSpec((d_model, tk), lambda i, k, s: (0, k)),   # w1 chunk
                pl.BlockSpec((1, tk),       lambda i, k, s: (0, k)),   # b1 chunk
                pl.BlockSpec((tk, d_model), lambda i, k, s: (k, 0)),   # w2 chunk
                pl.BlockSpec((1, d_model),  lambda i, k, s: (0, 0)),   # b2
            ],
            out_specs=pl.BlockSpec((tm, d_model), lambda i, k, s: (i, 0)),
            scratch_shapes=[pltpu.VMEM((tm, d_model), jnp.float32)],
        ),
        compiler_params=pltpu.CompilerParams(
            dimension_semantics=("parallel", "arbitrary"),
            vmem_limit_bytes=vmem_limit),
        cost_estimate=pl.CostEstimate(flops=flops, transcendentals=0,
                                      bytes_accessed=bytes_accessed),
    )(seed_arr, x2, w1, b1, w2, b2)

    return out2.reshape(B, S, d_model)


# ------------------------------- init / demo ---------------------------------

def init_params(key, d_model: int, d_ff: int):
    """nn.Linear-style init (uniform +-1/sqrt(fan_in)); weights stored (in, out)."""
    k1, k2, k3, k4 = jax.random.split(key, 4)
    bound1 = 1.0 / (d_model ** 0.5)
    bound2 = 1.0 / (d_ff ** 0.5)
    w1 = jax.random.uniform(k1, (d_model, d_ff), jnp.float32, -bound1, bound1)
    b1 = jax.random.uniform(k2, (1, d_ff), jnp.float32, -bound1, bound1)
    w2 = jax.random.uniform(k3, (d_ff, d_model), jnp.float32, -bound2, bound2)
    b2 = jax.random.uniform(k4, (1, d_model), jnp.float32, -bound2, bound2)
    return w1, b1, w2, b2


if __name__ == "__main__":
    B, S, d_model, d_ff = 2, 8, 32, 64
    dropout = 0.1
    seed = 1234

    key = jax.random.PRNGKey(0)
    kx, kp = jax.random.split(key)
    x = jax.random.normal(kx, (B, S, d_model), dtype=jnp.float32)
    w1, b1, w2, b2 = init_params(kp, d_model, d_ff)

    M = B * S
    x2 = x.reshape(M, d_model)
    hi = jax.lax.Precision.HIGHEST
    ref_eval = (jnp.dot(jnp.maximum(jnp.dot(x2, w1, precision=hi) + b1, 0.0),
                        w2, precision=hi) + b2)

    # 1) eval mode (dropout = identity), f32 path: check against pure JAX.
    y_eval = feed_forward_block(x, w1, b1, w2, b2, dropout_rate=dropout,
                                seed=seed, training=False)
    y_eval = jax.block_until_ready(y_eval)
    assert jnp.allclose(y_eval.reshape(M, d_model), ref_eval, atol=1e-2, rtol=1e-2), \
        "eval-mode mismatch"

    # 2) training mode: in-kernel dropout; rebuild the same stateless mask in JAX.
    y_train = feed_forward_block(x, w1, b1, w2, b2, dropout_rate=dropout,
                                 seed=seed, training=True)
    y_train = jax.block_until_ready(y_train)
    bits = _dropout_bits((M, d_ff), jnp.uint32(0), jnp.uint32(0), d_ff,
                         jnp.uint32(seed))
    keep = bits >= _dropout_threshold(dropout)
    h_ref = jnp.maximum(jnp.dot(x2, w1, precision=hi) + b1, 0.0)
    h_ref = jnp.where(keep, h_ref, 0.0) * (1.0 / (1.0 - dropout))
    ref_train = jnp.dot(h_ref, w2, precision=hi) + b2
    assert jnp.allclose(y_train.reshape(M, d_model), ref_train, atol=1e-2, rtol=1e-2), \
        "train-mode mismatch"

    # 3) bf16 MXU path (f32 accumulation): loose check against the f32 reference.
    y_bf16 = feed_forward_block(x, w1, b1, w2, b2, dropout_rate=dropout,
                                seed=seed, training=False, mxu_dtype=jnp.bfloat16)
    y_bf16 = jax.block_until_ready(y_bf16)
    assert jnp.allclose(y_bf16.reshape(M, d_model).astype(jnp.float32), ref_eval,
                        atol=1e-1, rtol=1e-1), "bf16-mode mismatch"

    print("KERNEL_OK")
</pallas_src>

<mosaic_0001>
module attributes {stable_mosaic.version = 11 : i64} {
  func.func @_ffn_kernel(%arg0: i32, %arg1: i32, %arg2: memref<1xi32, #tpu.memory_space<smem>>, %arg3: memref<16x32xf32, #tpu.memory_space<vmem>>, %arg4: memref<32x64xf32, #tpu.memory_space<vmem>>, %arg5: memref<1x64xf32, #tpu.memory_space<vmem>>, %arg6: memref<64x32xf32, #tpu.memory_space<vmem>>, %arg7: memref<1x32xf32, #tpu.memory_space<vmem>>, %arg8: memref<16x32xf32, #tpu.memory_space<vmem>>, %arg9: memref<16x32xf32, #tpu.memory_space<vmem>>) attributes {dimension_semantics = [#tpu.dimension_semantics<parallel>, #tpu.dimension_semantics<arbitrary>], iteration_bounds = array<i64: 1, 1>, scalar_prefetch = 1 : i64, scratch_operands = 1 : i64, tpu.core_type = #tpu.core_type<tc>, window_params = [{transform_indices = @transform_0, window_bounds = array<i64: 16, 32>}, {transform_indices = @transform_1, window_bounds = array<i64: 32, 64>}, {transform_indices = @transform_2, window_bounds = array<i64: 1, 64>}, {transform_indices = @transform_3, window_bounds = array<i64: 64, 32>}, {pipeline_mode = #tpu.pipeline_mode<synchronous>, transform_indices = @transform_4, window_bounds = array<i64: 1, 32>}, {transform_indices = @transform_5, window_bounds = array<i64: 16, 32>}]} {
    %c0_i32 = arith.constant 0 : i32
    %0 = arith.cmpi eq, %arg1, %c0_i32 : i32
    %1 = arith.extui %0 : i1 to i32
    %c0_i32_0 = arith.constant 0 : i32
    %2 = arith.cmpi ne, %1, %c0_i32_0 : i32
    scf.if %2 {
      %cst_14 = arith.constant 0.000000e+00 : f32
      %19 = vector.broadcast %cst_14 : f32 to vector<16x32xf32>
      %c0_15 = arith.constant 0 : index
      %c0_16 = arith.constant 0 : index
      %20 = vector.load %arg9[%c0_15, %c0_16] : memref<16x32xf32, #tpu.memory_space<vmem>>, vector<16x32xf32>
      tpu.vector_store %arg9[%c0_15, %c0_16], %19 {strides = array<i32>} : memref<16x32xf32, #tpu.memory_space<vmem>>, vector<16x32xf32>,
    } else {
    }
    %c0 = arith.constant 0 : index
    %c0_1 = arith.constant 0 : index
    %3 = vector.load %arg3[%c0, %c0_1] : memref<16x32xf32, #tpu.memory_space<vmem>>, vector<16x32xf32>
    %c0_2 = arith.constant 0 : index
    %c0_3 = arith.constant 0 : index
    %4 = vector.load %arg4[%c0_2, %c0_3] : memref<32x64xf32, #tpu.memory_space<vmem>>, vector<32x64xf32>
    %cst = arith.constant dense<0.000000e+00> : vector<16x64xf32>
    %5 = tpu.matmul %3, %4, %cst {dimension_numbers = #tpu.dot_dimension_numbers<[1], [0], [0], [1], [0, 0, 1, 1], [], []>} : vector<16x32xf32>, vector<32x64xf32>, vector<16x64xf32> -> vector<16x64xf32>
    %c0_4 = arith.constant 0 : index
    %c0_5 = arith.constant 0 : index
    %6 = vector.load %arg5[%c0_4, %c0_5] : memref<1x64xf32, #tpu.memory_space<vmem>>, vector<1x64xf32>
    %7 = vector.broadcast %6 : vector<1x64xf32> to vector<16x64xf32>
    %8 = arith.addf %5, %7 : vector<16x64xf32>
    %cst_6 = arith.constant 0.000000e+00 : f32
    %9 = vector.broadcast %cst_6 : f32 to vector<16x64xf32>
    %10 = arith.maximumf %8, %9 : vector<16x64xf32>
    %c0_7 = arith.constant 0 : index
    %c0_8 = arith.constant 0 : index
    %11 = vector.load %arg6[%c0_7, %c0_8] : memref<64x32xf32, #tpu.memory_space<vmem>>, vector<64x32xf32>
    %cst_9 = arith.constant dense<0.000000e+00> : vector<16x32xf32>
    %12 = tpu.matmul %10, %11, %cst_9 {dimension_numbers = #tpu.dot_dimension_numbers<[1], [0], [0], [1], [0, 0, 1, 1], [], []>} : vector<16x64xf32>, vector<64x32xf32>, vector<16x32xf32> -> vector<16x32xf32>
    %c0_i32_10 = arith.constant 0 : i32
    %13 = arith.cmpi slt, %arg1, %c0_i32_10 : i32
    %14 = arith.extui %13 : i1 to i32
    %c0_i32_11 = arith.constant 0 : i32
    %15 = arith.cmpi ne, %14, %c0_i32_11 : i32
    scf.if %15 {
      %c0_14 = arith.constant 0 : index
      %c0_15 = arith.constant 0 : index
      %19 = vector.load %arg9[%c0_14, %c0_15] : memref<16x32xf32, #tpu.memory_space<vmem>>, vector<16x32xf32>
      %20 = arith.addf %19, %12 : vector<16x32xf32>
      %c0_16 = arith.constant 0 : index
      %c0_17 = arith.constant 0 : index
      %21 = vector.load %arg9[%c0_16, %c0_17] : memref<16x32xf32, #tpu.memory_space<vmem>>, vector<16x32xf32>
      tpu.vector_store %arg9[%c0_16, %c0_17], %20 {strides = array<i32>} : memref<16x32xf32, #tpu.memory_space<vmem>>, vector<16x32xf32>,
    } else {
    }
    %c0_i32_12 = arith.constant 0 : i32
    %16 = arith.cmpi eq, %arg1, %c0_i32_12 : i32
    %17 = arith.extui %16 : i1 to i32
    %c0_i32_13 = arith.constant 0 : i32
    %18 = arith.cmpi ne, %17, %c0_i32_13 : i32
    scf.if %18 {
      %c0_14 = arith.constant 0 : index
      %c0_15 = arith.constant 0 : index
      %19 = vector.load %arg9[%c0_14, %c0_15] : memref<16x32xf32, #tpu.memory_space<vmem>>, vector<16x32xf32>
      %20 = arith.addf %19, %12 : vector<16x32xf32>
      %c0_16 = arith.constant 0 : index
      %c0_17 = arith.constant 0 : index
      %21 = vector.load %arg7[%c0_16, %c0_17] : memref<1x32xf32, #tpu.memory_space<vmem>>, vector<1x32xf32>
      %22 = vector.broadcast %21 : vector<1x32xf32> to vector<16x32xf32>
      %23 = arith.addf %20, %22 : vector<16x32xf32>
      %c0_18 = arith.constant 0 : index
      %c0_19 = arith.constant 0 : index
      %24 = vector.load %arg8[%c0_18, %c0_19] : memref<16x32xf32, #tpu.memory_space<vmem>>, vector<16x32xf32>
      tpu.vector_store %arg8[%c0_18, %c0_19], %23 {strides = array<i32>} : memref<16x32xf32, #tpu.memory_space<vmem>>, vector<16x32xf32>,
    } else {
    }
    return
  }
  func.func @transform_0(%arg0: i32, %arg1: i32, %arg2: memref<1xi32, #tpu.memory_space<smem>>) -> (i32, i32) {
    %c0_i32 = arith.constant 0 : i32
    %c0_i32_0 = arith.constant 0 : i32
    return %arg0, %c0_i32 : i32, i32
  }
  func.func @transform_1(%arg0: i32, %arg1: i32, %arg2: memref<1xi32, #tpu.memory_space<smem>>) -> (i32, i32) {
    %c0_i32 = arith.constant 0 : i32
    %c0_i32_0 = arith.constant 0 : i32
    return %c0_i32, %arg1 : i32, i32
  }
  func.func @transform_2(%arg0: i32, %arg1: i32, %arg2: memref<1xi32, #tpu.memory_space<smem>>) -> (i32, i32) {
    %c0_i32 = arith.constant 0 : i32
    %c0_i32_0 = arith.constant 0 : i32
    return %c0_i32, %arg1 : i32, i32
  }
  func.func @transform_3(%arg0: i32, %arg1: i32, %arg2: memref<1xi32, #tpu.memory_space<smem>>) -> (i32, i32) {
    %c0_i32 = arith.constant 0 : i32
    %c0_i32_0 = arith.constant 0 : i32
    return %arg1, %c0_i32 : i32, i32
  }
  func.func @transform_4(%arg0: i32, %arg1: i32, %arg2: memref<1xi32, #tpu.memory_space<smem>>) -> (i32, i32) {
    %c0_i32 = arith.constant 0 : i32
    %c0_i32_0 = arith.constant 0 : i32
    %c0_i32_1 = arith.constant 0 : i32
    return %c0_i32, %c0_i32_0 : i32, i32
  }
  func.func @transform_5(%arg0: i32, %arg1: i32, %arg2: memref<1xi32, #tpu.memory_space<smem>>) -> (i32, i32) {
    %c0_i32 = arith.constant 0 : i32
    %c0_i32_0 = arith.constant 0 : i32
    return %arg0, %c0_i32 : i32, i32
  }
}

</mosaic_0001>

<llo_original>
// kernel: tpu_custom_call.1
$region0: #{tpu_custom_call.1}
  #allocation0 [shape = 'u32[]', space=smem, size = 0x4, offset = 0x4, fixed_abs, tag = 'smem constant byte address 0x4 - core index']
  #allocation1 [shape = 'u32[144,128]{1,0:T(1,128)}', space=vmem, size = 0x12000, scoped, tag = 'internal scratch']
  #allocation2 [shape = 'f32[16,32]{1,0:T(8,128)}', space=vmem, size = 0x2000, scoped, tag = 'scratch operand']
  #allocation3 [shape = 's32[1]{0}', space=sflag, size = 0x4, scoped, tag = 'scoped memory for tpu_custom_call.1']
  #allocation4 [shape = 's32[1]{0:T(128)S(6)}', space=smem, size = 0x200, scoped, tag = 'prefetched SMEM operand 0']
  %s0 = inlined_call_operand.<no memory space> [shape: s32[1], index: 0, kind: input, shape index: {}]
  %s1 = inlined_call_operand.vmem [shape: f32[16,32], index: 1, kind: input, shape index: {}]
  %s2 = inlined_call_operand.vmem [shape: f32[32,64], index: 2, kind: input, shape index: {}]
  %s3 = inlined_call_operand.vmem [shape: f32[1,64], index: 3, kind: input, shape index: {}]
  %s4 = inlined_call_operand.vmem [shape: f32[64,32], index: 4, kind: input, shape index: {}]
  %s5 = inlined_call_operand.vmem [shape: f32[1,32], index: 5, kind: input, shape index: {}]
  %s6 = inlined_call_operand.hbm [shape: f32[16,32], index: 6, kind: output, shape index: {}]
  %s7 = sld [smem:[#allocation0]]
  $region42: #{tpu_custom_call.1} parent=0
    _
  %s9 = ssub.s32 1, %s7
  %s10 = scalar_select 0, %s9, %s7
  %11 = sst [smem:[#allocation4]] %s0
  $region1: #{tpu_custom_call.1} parent=0
    #allocation5 [shape = 'u8[8192]{0}', space=vmem, size = 0x2000, scoped, tag = 'output window, operand 0, single buffered']
    #allocation6 [shape = 's32[1]{0}', space=sflag, size = 0x4, scoped, tag = 'scoped memory for tpu_custom_call.1']
    %12 = vsyncpa [#allocation6], 0
    // Predicated region
    $region2: #{tpu_custom_call.1} parent=1 // pred_check
      _
    $region3: #{tpu_custom_call.1} parent=1 // pred_check_branch
      %14 = sbr.rel (0) target = $region5
    $region4: #{tpu_custom_call.1} parent=1 // pred_region
      _
    $region5: #{tpu_custom_call.1} parent=1 // pred_fallthru
      _
    // Predicated region
    $region6: #{tpu_custom_call.1} parent=1 // pred_check
      _
    $region7: #{tpu_custom_call.1} parent=1 // pred_check_branch
      %16 = sbr.rel (0) target = $region9
    $region8: #{tpu_custom_call.1} parent=1 // pred_region
      _
    $region9: #{tpu_custom_call.1} parent=1 // pred_fallthru
      _
    // Predicated region
    $region10: #{tpu_custom_call.1} parent=1 // pred_check
      _
    $region11: #{tpu_custom_call.1} parent=1 // pred_check_branch
      %18 = sbr.rel (0) target = $region13
    $region12: #{tpu_custom_call.1} parent=1 // pred_region
      _
    $region13: #{tpu_custom_call.1} parent=1 // pred_fallthru
      _
    // Predicated region
    $region14: #{tpu_custom_call.1} parent=1 // pred_check
      _
    $region15: #{tpu_custom_call.1} parent=1 // pred_check_branch
      %20 = sbr.rel (0) target = $region17
    $region16: #{tpu_custom_call.1} parent=1 // pred_region
      _
    $region17: #{tpu_custom_call.1} parent=1 // pred_fallthru
      _
    // Predicated region
    $region18: #{tpu_custom_call.1} parent=1 // pred_check
      _
    $region19: #{tpu_custom_call.1} parent=1 // pred_check_branch
      %22 = sbr.rel (0) target = $region21
    $region20: #{tpu_custom_call.1} parent=1 // pred_region
      _
    $region21: #{tpu_custom_call.1} parent=1 // pred_fallthru
      _
    %p23 = scmp.eq.s32.totalorder 0, 0
    // Predicated region
    $region22: #{tpu_custom_call.1} parent=1 // pred_check
      %p24 = pneg %p23
    $region23: #{tpu_custom_call.1} parent=1 // pred_check_branch
      %26 = sbr.rel (%p24) target = $region25
    $region24: #{tpu_custom_call.1} parent=1 // pred_region
      %vm27 = vcmask 261120
      %28 = vst.msk [vmem:[#allocation2] sm:$0xff] %vm27, 0.0
      %29 = vst.msk [vmem:[#allocation2 + $0x8] sm:$0xff] %vm27, 0.0
    $region25: #{tpu_custom_call.1} parent=1 // pred_fallthru
      _
    %v30 = vld [vmem:[%s1] sm:$0xff]
    %v31 = vld [vmem:[%s1 + $0x8] sm:$0xff]
    %v32 = vld [vmem:[%s2] sm:$0xff]
    %v33 = vld [vmem:[%s2 + $0x8] sm:$0xff]
    %v34 = vld [vmem:[%s2 + $0x10] sm:$0xff]
    %v35 = vld [vmem:[%s2 + $0x18] sm:$0xff]
    %v36 = vld [vmem:[%s3] sm:$0x1]
    %v38 = vlaneseq
    %v39 = vshrl.u32 %v38, 7
    %v40 = vsub.s32 0, %v39
    %v41 = vrot.slane %v36, %v40
    %vm43 = vcmask 261120
    %v45 = vsel %vm43, %v30, 0
    %v48 = vsel %vm43, %v31, 0
    %50 = vmatprep.subr.mxu0 0.0
    %51 = vmatpush1.msra.mxu0 %v32
    %52 = vmatprep.subr.mxu0 0.0
    %53 = vmatpush1.msra.mxu0 %v33
    %54 = vmatprep.subr.mxu0 0.0
    %55 = vmatpush1.msra.mxu0 %v34
    %56 = vmatprep.subr.mxu0 0.0
    %57 = vmatpush1.msra.mxu0 %v35
    %58 = vmatprep.subr.mxu0 0.0
    %59 = vmatpush1.msra.mxu0 0.0
    %60 = vmatprep.subr.mxu0 0.0
    %61 = vmatpush1.msra.mxu0 0.0
    %62 = vmatprep.subr.mxu0 0.0
    %63 = vmatpush1.msra.mxu0 0.0
    %64 = vmatprep.subr.mxu0 0.0
    %65 = vmatpush1.msra.mxu0 0.0
    %66 = vmatprep.subr.mxu0 0.0
    %67 = vmatpush1.msra.mxu0 0.0
    %68 = vmatprep.subr.mxu0 0.0
    %69 = vmatpush1.msra.mxu0 0.0
    %70 = vmatprep.subr.mxu0 0.0
    %71 = vmatpush1.msra.mxu0 0.0
    %72 = vmatprep.subr.mxu0 0.0
    %73 = vmatpush1.msra.mxu0 0.0
    %74 = vmatprep.subr.mxu0 0.0
    %75 = vmatpush1.msra.mxu0 0.0
    %76 = vmatprep.subr.mxu0 0.0
    %77 = vmatpush1.msra.mxu0 0.0
    %78 = vmatprep.subr.mxu0 0.0
    %79 = vmatpush1.msra.mxu0 0.0
    %80 = vmatprep.subr.mxu0 0.0
    %81 = vmatpush1.msra.mxu0 0.0
    %82 = vmatprep.subr.mxu0 0.0
    %83 = vmatpush1.msra.mxu0 0.0
    %84 = vmatprep.subr.mxu0 0.0
    %85 = vmatpush1.msra.mxu0 0.0
    %86 = vmatprep.subr.mxu0 0.0
    %87 = vmatpush1.msra.mxu0 0.0
    %88 = vmatprep.subr.mxu0 0.0
    %89 = vmatpush1.msra.mxu0 0.0
    %90 = vmatprep.subr.mxu0 0.0
    %91 = vmatpush1.msra.mxu0 0.0
    %92 = vmatprep.subr.mxu0 0.0
    %93 = vmatpush1.msra.mxu0 0.0
    %94 = vmatprep.subr.mxu0 0.0
    %95 = vmatpush1.msra.mxu0 0.0
    %96 = vmatprep.subr.mxu0 0.0
    %97 = vmatpush1.msra.mxu0 0.0
    %98 = vmatprep.subr.mxu0 0.0
    %99 = vmatpush1.msra.mxu0 0.0
    %100 = vmatprep.subr.mxu0 0.0
    %101 = vmatpush1.msra.mxu0 0.0
    %102 = vmatprep.subr.mxu0 0.0
    %103 = vmatpush1.msra.mxu0 0.0
    %104 = vmatprep.subr.mxu0 0.0
    %105 = vmatpush1.msra.mxu0 0.0
    %106 = vmatprep.subr.mxu0 0.0
    %107 = vmatpush1.msra.mxu0 0.0
    %108 = vmatprep.subr.mxu0 0.0
    %109 = vmatpush1.msra.mxu0 0.0
    %110 = vmatprep.subr.mxu0 0.0
    %111 = vmatpush1.msra.mxu0 0.0
    %112 = vmatprep.subr.mxu0 0.0
    %113 = vmatpush1.msra.mxu0 0.0
    %114 = vmatprep.mubr.f32.mxu0 0.0
    %115 = vmatmul.mubr.f32.gmra.mrb[0].mxu0 %v45
    %v116 = vpop.f32.mrb[0].mxu0
    %v117 = vadd.f32 %v41, %v116
    %v118 = vpop.f32.mrb[0].mxu0
    %119 = vmatprep.mubr.f32.mxu0 0.0
    %120 = vmatmul.mubr.f32.gmra.mrb[0].mxu0 %v48
    %v121 = vpop.f32.mrb[0].mxu0
    %v122 = vadd.f32 %v41, %v121
    %v123 = vpop.f32.mrb[0].mxu0
    %124 = vdwg.mxu0
    %v125 = vmax.f32 %v117, 0.0
    %v126 = vmax.f32 %v122, 0.0
    %v127 = vld [vmem:[%s4] sm:$0xff]
    %v128 = vld [vmem:[%s4 + $0x8] sm:$0xff]
    %v129 = vld [vmem:[%s4 + $0x10] sm:$0xff]
    %v130 = vld [vmem:[%s4 + $0x18] sm:$0xff]
    %v131 = vld [vmem:[%s4 + $0x20] sm:$0xff]
    %v132 = vld [vmem:[%s4 + $0x28] sm:$0xff]
    %v133 = vld [vmem:[%s4 + $0x30] sm:$0xff]
    %v134 = vld [vmem:[%s4 + $0x38] sm:$0xff]
    %vm135 = vcmask 523264
    %v137 = vsel %vm135, %v125, 0
    %v140 = vsel %vm135, %v126, 0
    %142 = vmatprep.subr.mxu0 0.0
    %143 = vmatpush1.msra.mxu0 %v127
    %144 = vmatprep.subr.mxu0 0.0
    %145 = vmatpush1.msra.mxu0 %v128
    %146 = vmatprep.subr.mxu0 0.0
    %147 = vmatpush1.msra.mxu0 %v129
    %148 = vmatprep.subr.mxu0 0.0
    %149 = vmatpush1.msra.mxu0 %v130
    %150 = vmatprep.subr.mxu0 0.0
    %151 = vmatpush1.msra.mxu0 %v131
    %152 = vmatprep.subr.mxu0 0.0
    %153 = vmatpush1.msra.mxu0 %v132
    %154 = vmatprep.subr.mxu0 0.0
    %155 = vmatpush1.msra.mxu0 %v133
    %156 = vmatprep.subr.mxu0 0.0
    %157 = vmatpush1.msra.mxu0 %v134
    %158 = vmatprep.subr.mxu0 0.0
    %159 = vmatpush1.msra.mxu0 0.0
    %160 = vmatprep.subr.mxu0 0.0
    %161 = vmatpush1.msra.mxu0 0.0
    %162 = vmatprep.subr.mxu0 0.0
    %163 = vmatpush1.msra.mxu0 0.0
    %164 = vmatprep.subr.mxu0 0.0
    %165 = vmatpush1.msra.mxu0 0.0
    %166 = vmatprep.subr.mxu0 0.0
    %167 = vmatpush1.msra.mxu0 0.0
    %168 = vmatprep.subr.mxu0 0.0
    %169 = vmatpush1.msra.mxu0 0.0
    %170 = vmatprep.subr.mxu0 0.0
    %171 = vmatpush1.msra.mxu0 0.0
    %172 = vmatprep.subr.mxu0 0.0
    %173 = vmatpush1.msra.mxu0 0.0
    %174 = vmatprep.subr.mxu0 0.0
    %175 = vmatpush1.msra.mxu0 0.0
    %176 = vmatprep.subr.mxu0 0.0
    %177 = vmatpush1.msra.mxu0 0.0
    %178 = vmatprep.subr.mxu0 0.0
    %179 = vmatpush1.msra.mxu0 0.0
    %180 = vmatprep.subr.mxu0 0.0
    %181 = vmatpush1.msra.mxu0 0.0
    %182 = vmatprep.subr.mxu0 0.0
    %183 = vmatpush1.msra.mxu0 0.0
    %184 = vmatprep.subr.mxu0 0.0
    %185 = vmatpush1.msra.mxu0 0.0
    %186 = vmatprep.subr.mxu0 0.0
    %187 = vmatpush1.msra.mxu0 0.0
    %188 = vmatprep.subr.mxu0 0.0
    %189 = vmatpush1.msra.mxu0 0.0
    %190 = vmatprep.subr.mxu0 0.0
    %191 = vmatpush1.msra.mxu0 0.0
    %192 = vmatprep.subr.mxu0 0.0
    %193 = vmatpush1.msra.mxu0 0.0
    %194 = vmatprep.subr.mxu0 0.0
    %195 = vmatpush1.msra.mxu0 0.0
    %196 = vmatprep.subr.mxu0 0.0
    %197 = vmatpush1.msra.mxu0 0.0
    %198 = vmatprep.subr.mxu0 0.0
    %199 = vmatpush1.msra.mxu0 0.0
    %200 = vmatprep.subr.mxu0 0.0
    %201 = vmatpush1.msra.mxu0 0.0
    %202 = vmatprep.subr.mxu0 0.0
    %203 = vmatpush1.msra.mxu0 0.0
    %204 = vmatprep.subr.mxu0 0.0
    %205 = vmatpush1.msra.mxu0 0.0
    %206 = vmatprep.mubr.f32.mxu0 0.0
    %207 = vmatmul.mubr.f32.gmra.mrb[0].mxu0 %v137
    %v208 = vpop.f32.mrb[0].mxu0
    %v209 = vadd.f32 0.0, %v208
    %v210 = vpop.f32.mrb[0].mxu0
    %211 = vmatprep.mubr.f32.mxu0 0.0
    %212 = vmatmul.mubr.f32.gmra.mrb[0].mxu0 %v140
    %v213 = vpop.f32.mrb[0].mxu0
    %v214 = vadd.f32 0.0, %v213
    %v215 = vpop.f32.mrb[0].mxu0
    %216 = vdwg.mxu0
    %p217 = scmp.lt.s32.totalorder 0, 0
    // Predicated region
    $region26: #{tpu_custom_call.1} parent=1 // pred_check
      %p218 = pneg %p217
    $region27: #{tpu_custom_call.1} parent=1 // pred_check_branch
      %220 = sbr.rel (%p218) target = $region29
    $region28: #{tpu_custom_call.1} parent=1 // pred_region
      %v221 = vld [vmem:[#allocation2] sm:$0xff]
      %v222 = vld [vmem:[#allocation2 + $0x8] sm:$0xff]
      %v223 = vadd.f32 %v221, %v209
      %v224 = vadd.f32 %v222, %v214
      %225 = vst.msk [vmem:[#allocation2] sm:$0xff] %vm43, %v223
      %226 = vst.msk [vmem:[#allocation2 + $0x8] sm:$0xff] %vm43, %v224
    $region29: #{tpu_custom_call.1} parent=1 // pred_fallthru
      _
    // Predicated region
    $region30: #{tpu_custom_call.1} parent=1 // pred_check
      %p227 = pneg %p23
    $region31: #{tpu_custom_call.1} parent=1 // pred_check_branch
      %229 = sbr.rel (%p227) target = $region33
    $region32: #{tpu_custom_call.1} parent=1 // pred_region
      %v230 = vld [vmem:[#allocation2] sm:$0xff]
      %v231 = vld [vmem:[#allocation2 + $0x8] sm:$0xff]
      %v232 = vadd.f32 %v230, %v209
      %v233 = vadd.f32 %v231, %v214
      %v234 = vld [vmem:[%s5] sm:$0x1]
      %v236 = vlaneseq
      %v237 = vshrl.u32 %v236, 7
      %v238 = vsub.s32 0, %v237
      %v239 = vrot.slane %v234, %v238
      %v241 = vadd.f32 %v232, %v239
      %v242 = vadd.f32 %v233, %v239
      %243 = vst.msk [vmem:[#allocation5] sm:$0xff] %vm43, %v241
      %244 = vst.msk [vmem:[#allocation5 + $0x8] sm:$0xff] %vm43, %v242
    $region33: #{tpu_custom_call.1} parent=1 // pred_fallthru
      _
    // Predicated region
    $region34: #{tpu_custom_call.1} parent=1 // pred_check
      _
    $region35: #{tpu_custom_call.1} parent=1 // pred_check_branch
      %246 = sbr.rel (0) target = $region37
    $region36: #{tpu_custom_call.1} parent=1 // pred_region
      %s248 = ssub.s32 256, 256
      %249 = vsyncadd [#allocation6], %s248
      %s250 = sshll.u32 [#allocation5], 4
      %s251 = int_to_ptr.vmem [resolvable:$true] %s250
      %256 = dma.vmem_to_hbm [thread:$0]  %s251, 256, %s6, [#allocation6], 128, 128, 8
    $region37: #{tpu_custom_call.1} parent=1 // pred_fallthru
      _
    // Predicated region
    $region38: #{tpu_custom_call.1} parent=1 // pred_check
      _
    $region39: #{tpu_custom_call.1} parent=1 // pred_check_branch
      %258 = sbr.rel (0) target = $region41
    $region40: #{tpu_custom_call.1} parent=1 // pred_region
      %259 = dma.done [#allocation6], 256
    $region41: #{tpu_custom_call.1} parent=1 // pred_fallthru
      _
    %260 = vsyncpa [#allocation6], 1

</llo_original>
